<compile_context>
chip_gen: v7x
topology: tpu7x:2x2x1
jax: 0.10.0
libtpu: 0.0.40
codegen_flags: <defaults>
</compile_context>

<pallas_src>
import math
import functools

import jax
import jax.numpy as jnp
from jax import lax
from jax.experimental import pallas as pl
from jax.experimental.pallas import tpu as pltpu


# ----------------------------------------------------------------------------
# Reference PE buffer (used only for the correctness check in __main__).
# Requires even model_dim (same latent restriction as the PyTorch original).
# ----------------------------------------------------------------------------
def make_pe_table(max_len: int, model_dim: int) -> jnp.ndarray:
    position = jnp.arange(max_len, dtype=jnp.float32)[:, None]              # (L, 1)
    div_term = jnp.exp(
        jnp.arange(0, model_dim, 2, dtype=jnp.float32)
        * (-math.log(10000.0) / model_dim)
    )                                                                        # (D/2,)
    pe = jnp.zeros((max_len, model_dim), dtype=jnp.float32)
    pe = pe.at[:, 0::2].set(jnp.sin(position * div_term))
    pe = pe.at[:, 1::2].set(jnp.cos(position * div_term))
    return pe[:, None, :]                                                    # (L, 1, D)


# ----------------------------------------------------------------------------
# In-kernel positional-encoding values for one (seq_tile, B*D) block.
# ----------------------------------------------------------------------------
def _pe_values(seq_tile: int, width: int, model_dim: int) -> jnp.ndarray:
    # Absolute sequence position of each block row (column vector).
    seq0 = pl.program_id(0) * seq_tile
    pos = (lax.broadcasted_iota(jnp.int32, (seq_tile, 1), 0) + seq0).astype(jnp.float32)
    # Column index within the flattened (batch * model_dim) axis; PE only
    # depends on d = col % model_dim, so the same values repeat per batch.
    col = lax.broadcasted_iota(jnp.int32, (1, width), 1)
    d = col % model_dim
    parity = d % 2                                    # 0 -> sin row, 1 -> cos row
    d_even = (d - parity).astype(jnp.float32)
    # freq/phase are (1, width): exp runs on one row only, sin on the full tile.
    freq = jnp.exp(d_even * jnp.float32(-math.log(10000.0) / model_dim))
    phase = parity.astype(jnp.float32) * jnp.float32(math.pi / 2.0)
    # sin(a) for even d; sin(a + pi/2) == cos(a) for odd d.
    return jnp.sin(pos * freq + phase)                # (seq_tile, width)


# ----------------------------------------------------------------------------
# Kernels
# ----------------------------------------------------------------------------
def _pe_eval_kernel(x_ref, o_ref, *, model_dim):
    ts, width = x_ref.shape
    y = x_ref[...].astype(jnp.float32) + _pe_values(ts, width, model_dim)
    o_ref[...] = y.astype(o_ref.dtype)


def _pe_train_kernel(x_ref, r_ref, o_ref, *, model_dim, keep_threshold, keep_scale):
    ts, width = x_ref.shape
    y = x_ref[...].astype(jnp.float32) + _pe_values(ts, width, model_dim)
    # Inverted dropout via a single integer-threshold compare on uniform int32
    # bits (threshold already shifted into the signed domain wrapper-side).
    keep = r_ref[...] >= jnp.int32(keep_threshold)
    y = jnp.where(keep, y * jnp.float32(keep_scale), 0.0)
    o_ref[...] = y.astype(o_ref.dtype)


# ----------------------------------------------------------------------------
# Wrapper
# ----------------------------------------------------------------------------
def _choose_seq_tile(seq_len: int, row_bytes: int, target_block_bytes: int) -> int:
    """Largest seq tile with <= target bytes per block; multiple of 8 (sublane
    dense) unless it covers the whole sequence."""
    rows = max(8, target_block_bytes // max(row_bytes, 1))
    if rows >= seq_len:
        return seq_len
    return (rows // 8) * 8


def positional_encoding_forward(x, *, rate: float = 0.1, training: bool = False,
                                rng_key=None, max_len: int = 5000,
                                target_block_bytes: int = 1 << 20):
    """dropout(x + pe[:S]) with x of shape (seq_len, batch, model_dim)."""
    S, B, D = x.shape
    assert S <= max_len, "sequence longer than max_len"
    assert 0.0 <= rate < 1.0

    BD = B * D
    x2 = x.reshape(S, BD)                 # free collapse of contiguous trailing dims

    ts = _choose_seq_tile(S, BD * x.dtype.itemsize, target_block_bytes)
    grid = (pl.cdiv(S, ts),)
    blk = pl.BlockSpec((ts, BD), lambda i: (i, 0))

    compiler_params = pltpu.CompilerParams(
        dimension_semantics=("parallel",),          # independent tiles -> both v7x TCs
        vmem_limit_bytes=32 * 1024 * 1024,          # explicit headroom, fits every gen
    )

    use_dropout = training and rate > 0.0
    if use_dropout:
        if rng_key is None:
            rng_key = jax.random.PRNGKey(0)
        # Random bits generated once, outside the kernel: portable (works on real
        # TPU and in interpret mode) and independent of the tiling, so results are
        # reproducible across tile sizes / generations.
        # TODO(synk): on real TPU hardware, in-kernel pltpu.prng_seed/prng_random_bits
        # would remove this extra HBM stream, but those primitives have no
        # interpret-mode lowering.
        rbits = lax.bitcast_convert_type(
            jax.random.bits(rng_key, (S, BD), dtype=jnp.uint32), jnp.int32)
        t_unsigned = min(int(round(rate * (1 << 32))), (1 << 32) - 1)
        keep_threshold = t_unsigned - (1 << 31)     # unsigned threshold -> int32 domain
        kernel = functools.partial(_pe_train_kernel, model_dim=D,
                                   keep_threshold=keep_threshold,
                                   keep_scale=1.0 / (1.0 - rate))
        in_specs = [blk, blk]
        args = (x2, rbits)
    else:
        kernel = functools.partial(_pe_eval_kernel, model_dim=D)
        in_specs = [blk]
        args = (x2,)

    out = pl.pallas_call(
        kernel,
        out_shape=jax.ShapeDtypeStruct((S, BD), x.dtype),
        grid=grid,
        in_specs=in_specs,
        out_specs=blk,
        compiler_params=compiler_params,
    )(*args)
    return out.reshape(S, B, D)


# ----------------------------------------------------------------------------
# Demo / correctness check
# ----------------------------------------------------------------------------
if __name__ == "__main__":
    SEQ, BATCH, MODEL_DIM, MAX_LEN = 8, 2, 32, 64

    key = jax.random.PRNGKey(0)
    x = jax.random.normal(key, (SEQ, BATCH, MODEL_DIM), dtype=jnp.float32)

    ref_pe = make_pe_table(MAX_LEN, MODEL_DIM)
    ref_eval = x + ref_pe[:SEQ]

    # Eval mode: dropout is identity -> must match x + pe.
    out_eval = jax.block_until_ready(
        positional_encoding_forward(x, rate=0.1, training=False, max_len=MAX_LEN))
    assert out_eval.shape == (SEQ, BATCH, MODEL_DIM)
    assert jnp.allclose(out_eval, ref_eval, atol=1e-4, rtol=1e-4), "eval-mode mismatch"

    # Training mode: survivors are (x + pe) / (1 - p), dropped elements are exactly 0.
    rate = 0.1
    out_train = jax.block_until_ready(
        positional_encoding_forward(x, rate=rate, training=True,
                                    rng_key=jax.random.PRNGKey(123), max_len=MAX_LEN))
    scaled = ref_eval / (1.0 - rate)
    dropped = out_train == 0.0
    kept_ok = jnp.isclose(out_train, scaled, atol=1e-4, rtol=1e-4)
    assert bool(jnp.all(jnp.logical_or(dropped, kept_ok))), "train-mode dropout mismatch"
    drop_frac = float(jnp.mean(dropped.astype(jnp.float32)))
    assert 0.0 < drop_frac < 0.4, "dropout fraction far from rate"

    print("KERNEL_OK")
</pallas_src>

<mosaic_0001>
module attributes {stable_mosaic.version = 11 : i64} {
  func.func @_pe_eval_kernel(%arg0: i32, %arg1: memref<8x64xf32, #tpu.memory_space<vmem>>, %arg2: memref<8x64xf32, #tpu.memory_space<vmem>>) attributes {dimension_semantics = [#tpu.dimension_semantics<parallel>], iteration_bounds = array<i64: 1>, scalar_prefetch = 0 : i64, scratch_operands = 0 : i64, tpu.core_type = #tpu.core_type<tc>, window_params = [{transform_indices = @transform_0, window_bounds = array<i64: 8, 64>}, {transform_indices = @transform_1, window_bounds = array<i64: 8, 64>}]} {
    %c0 = arith.constant 0 : index
    %c0_0 = arith.constant 0 : index
    %0 = vector.load %arg1[%c0, %c0_0] : memref<8x64xf32, #tpu.memory_space<vmem>>, vector<8x64xf32>
    %c8_i32 = arith.constant 8 : i32
    %1 = arith.muli %arg0, %c8_i32 : i32
    %2 = tpu.iota {dimensions = array<i32: 0>} : vector<8x1xi32>
    %3 = vector.broadcast %1 : i32 to vector<8x1xi32>
    %4 = arith.addi %2, %3 : vector<8x1xi32>
    %5 = arith.sitofp %4 : vector<8x1xi32> to vector<8x1xf32>
    %6 = tpu.iota {dimensions = array<i32: 1>} : vector<1x64xi32>
    %c32_i32 = arith.constant 32 : i32
    %c0_i32 = arith.constant 0 : i32
    %7 = arith.cmpi eq, %c32_i32, %c0_i32 : i32
    %c1_i32 = arith.constant 1 : i32
    %8 = arith.select %7, %c1_i32, %c32_i32 : i32
    %9 = vector.broadcast %8 : i32 to vector<1x64xi32>
    %10 = arith.remsi %6, %9 : vector<1x64xi32>
    %c0_i32_1 = arith.constant 0 : i32
    %11 = vector.broadcast %c0_i32_1 : i32 to vector<1x64xi32>
    %12 = arith.cmpi ne, %10, %11 : vector<1x64xi32>
    %c0_i32_2 = arith.constant 0 : i32
    %13 = vector.broadcast %c0_i32_2 : i32 to vector<1x64xi32>
    %14 = arith.cmpi slt, %10, %13 : vector<1x64xi32>
    %c0_i32_3 = arith.constant 0 : i32
    %15 = arith.cmpi slt, %8, %c0_i32_3 : i32
    %16 = vector.broadcast %15 : i1 to vector<1x64xi1>
    %17 = vector.broadcast %16 : vector<1x64xi1> to vector<1x64xi1>
    %18 = arith.xori %14, %17 : vector<1x64xi1>
    %19 = arith.andi %18, %12 : vector<1x64xi1>
    %20 = vector.broadcast %8 : i32 to vector<1x64xi32>
    %21 = arith.addi %10, %20 : vector<1x64xi32>
    %22 = arith.select %19, %21, %10 : vector<1x64xi1>, vector<1x64xi32>
    %c2_i32 = arith.constant 2 : i32
    %c0_i32_4 = arith.constant 0 : i32
    %23 = arith.cmpi eq, %c2_i32, %c0_i32_4 : i32
    %c1_i32_5 = arith.constant 1 : i32
    %24 = arith.select %23, %c1_i32_5, %c2_i32 : i32
    %25 = vector.broadcast %24 : i32 to vector<1x64xi32>
    %26 = arith.remsi %22, %25 : vector<1x64xi32>
    %c0_i32_6 = arith.constant 0 : i32
    %27 = vector.broadcast %c0_i32_6 : i32 to vector<1x64xi32>
    %28 = arith.cmpi ne, %26, %27 : vector<1x64xi32>
    %c0_i32_7 = arith.constant 0 : i32
    %29 = vector.broadcast %c0_i32_7 : i32 to vector<1x64xi32>
    %30 = arith.cmpi slt, %26, %29 : vector<1x64xi32>
    %c0_i32_8 = arith.constant 0 : i32
    %31 = arith.cmpi slt, %24, %c0_i32_8 : i32
    %32 = vector.broadcast %31 : i1 to vector<1x64xi1>
    %33 = vector.broadcast %32 : vector<1x64xi1> to vector<1x64xi1>
    %34 = arith.xori %30, %33 : vector<1x64xi1>
    %35 = arith.andi %34, %28 : vector<1x64xi1>
    %36 = vector.broadcast %24 : i32 to vector<1x64xi32>
    %37 = arith.addi %26, %36 : vector<1x64xi32>
    %38 = arith.select %35, %37, %26 : vector<1x64xi1>, vector<1x64xi32>
    %39 = arith.subi %22, %38 : vector<1x64xi32>
    %40 = arith.sitofp %39 : vector<1x64xi32> to vector<1x64xf32>
    %cst = arith.constant -0.287823141 : f32
    %41 = vector.broadcast %cst : f32 to vector<1x64xf32>
    %42 = arith.mulf %40, %41 : vector<1x64xf32>
    %43 = math.exp %42 : vector<1x64xf32>
    %44 = arith.sitofp %38 : vector<1x64xi32> to vector<1x64xf32>
    %cst_9 = arith.constant 1.57079637 : f32
    %45 = vector.broadcast %cst_9 : f32 to vector<1x64xf32>
    %46 = arith.mulf %44, %45 : vector<1x64xf32>
    %47 = vector.broadcast %5 : vector<8x1xf32> to vector<8x64xf32>
    %48 = vector.broadcast %43 : vector<1x64xf32> to vector<8x64xf32>
    %49 = arith.mulf %47, %48 : vector<8x64xf32>
    %50 = vector.broadcast %46 : vector<1x64xf32> to vector<8x64xf32>
    %51 = arith.addf %49, %50 : vector<8x64xf32>
    %52 = math.sin %51 : vector<8x64xf32>
    %53 = arith.addf %0, %52 : vector<8x64xf32>
    %c0_10 = arith.constant 0 : index
    %c0_11 = arith.constant 0 : index
    %54 = vector.load %arg2[%c0_10, %c0_11] : memref<8x64xf32, #tpu.memory_space<vmem>>, vector<8x64xf32>
    tpu.vector_store %arg2[%c0_10, %c0_11], %53 {strides = array<i32>} : memref<8x64xf32, #tpu.memory_space<vmem>>, vector<8x64xf32>,
    return
  }
  func.func @transform_0(%arg0: i32) -> (i32, i32) {
    %c0_i32 = arith.constant 0 : i32
    %c0_i32_0 = arith.constant 0 : i32
    return %arg0, %c0_i32 : i32, i32
  }
  func.func @transform_1(%arg0: i32) -> (i32, i32) {
    %c0_i32 = arith.constant 0 : i32
    %c0_i32_0 = arith.constant 0 : i32
    return %arg0, %c0_i32 : i32, i32
  }
}

</mosaic_0001>

<llo_original>
// kernel: tpu_custom_call.1
$region0: #{tpu_custom_call.1}
  #allocation0 [shape = 'u32[]', space=smem, size = 0x4, offset = 0x4, fixed_abs, tag = 'smem constant byte address 0x4 - core index']
  #allocation1 [shape = 'u32[144,128]{1,0:T(1,128)}', space=vmem, size = 0x12000, scoped, tag = 'internal scratch']
  %s0 = inlined_call_operand.hbm [shape: f32[8,64], index: 0, kind: input, shape index: {}]
  %s1 = inlined_call_operand.hbm [shape: f32[8,64], index: 1, kind: output, shape index: {}]
  %s2 = sld [smem:[#allocation0]]
  $region18: #{tpu_custom_call.1} parent=0
    _
  %s4 = ssub.s32 1, %s2
  %s5 = scalar_select 0, %s4, %s2
  $region1: #{tpu_custom_call.1} parent=0
    #allocation2 [shape = 'u8[4096]{0}', space=vmem, size = 0x1000, scoped, tag = 'input window, operand 0, single buffered']
    #allocation3 [shape = 's32[1]{0}', space=sflag, size = 0x4, scoped, tag = 'scoped memory for tpu_custom_call.1']
    #allocation4 [shape = 's32[1]{0}', space=sflag, size = 0x4, scoped, tag = 'scoped memory for tpu_custom_call.1']
    #allocation5 [shape = 'u8[4096]{0}', space=vmem, size = 0x1000, scoped, tag = 'output window, operand 0, single buffered']
    %6 = vsyncpa [#allocation3], 0
    %7 = vsyncpa [#allocation4], 0
    // Predicated region
    $region2: #{tpu_custom_call.1} parent=1 // pred_check
      _
    $region3: #{tpu_custom_call.1} parent=1 // pred_check_branch
      %9 = sbr.rel (0) target = $region5
    $region4: #{tpu_custom_call.1} parent=1 // pred_region
      %s11 = ssub.s32 128, 128
      %12 = vsyncadd [#allocation3], %s11
      %s14 = sshll.u32 [#allocation2], 4
      %s15 = int_to_ptr.vmem [resolvable:$true] %s14
      %17 = dma.hbm_to_vmem [thread:$0]  %s0, 128, %s15, [#allocation3]
    $region5: #{tpu_custom_call.1} parent=1 // pred_fallthru
      _
    // Predicated region
    $region6: #{tpu_custom_call.1} parent=1 // pred_check
      _
    $region7: #{tpu_custom_call.1} parent=1 // pred_check_branch
      %19 = sbr.rel (0) target = $region9
    $region8: #{tpu_custom_call.1} parent=1 // pred_region
      %20 = dma.done [#allocation3], 128
    $region9: #{tpu_custom_call.1} parent=1 // pred_fallthru
      _
    %v21 = vld [vmem:[#allocation2] sm:$0xff]
    %s22 = smul.u32 0, 8
    %v23 = vlaneseq
    %v24 = vshrl.u32 %v23, 7
    %v25 = vstv %s22
    %v26 = vadd.s32 %v24, %v25
    %v27 = vcvt.s32.f32 %v26
    %v28 = vlaneseq
    %v29 = vand.u32 %v28, 127
    %vm30 = vcmp.lt.s32.totalorder %v29, 0
    %v31 = vsub.s32 0, %v29
    %v32 = vsel %vm30, %v31, %v29
    %v33 = vshrl.u32 %v32, 5
    %v34 = vand.u32 %v32, 31
    %v35 = vsub.s32 0, %v34
    %v36 = vsel %vm30, %v35, %v34
    %vm37 = vcmp.ne.s32.totalorder %v36, 0
    %vm38 = vcmp.lt.s32.totalorder %v36, 0
    %vm39 = vmand %vm38, %vm37
    %v40 = vadd.s32 %v36, 32
    %v41 = vsel %vm39, %v40, %v36
    %vm42 = vcmp.lt.s32.totalorder %v41, 0
    %v43 = vsub.s32 0, %v41
    %v44 = vsel %vm42, %v43, %v41
    %v45 = vshrl.u32 %v44, 1
    %v46 = vand.u32 %v44, 1
    %v47 = vsub.s32 0, %v46
    %v48 = vsel %vm42, %v47, %v46
    %vm49 = vcmp.ne.s32.totalorder %v48, 0
    %vm50 = vcmp.lt.s32.totalorder %v48, 0
    %vm51 = vmand %vm50, %vm49
    %v52 = vadd.s32 %v48, 2
    %v53 = vsel %vm51, %v52, %v48
    %v54 = vsub.s32 %v41, %v53
    %v55 = vcvt.s32.f32 %v54
    %v56 = vmul.f32 %v55, -0.28782314
    %v57 = vmul.f32 %v56, 1.442695
    %v58 = vpow.pop %v57
    %v59 = vcvt.s32.f32 %v53
    %v60 = vmul.f32 %v59, 1.5707964
    %v61 = vmul.f32 %v27, %v58
    %v62 = vadd.f32 %v61, %v60
    %v63 = vand.u32 2147483647, %v62
    %vm64 = vcmp.le.f32.partialorder %v63, 0.7853982
    %vm65 = vcmp.lt.s32.totalorder %v62, 0
    %v66 = vand.u32 %v62, 2139095040
    %v67 = vshrl.u32 %v66, 23
    %v68 = vsub.s32 %v67, 127
    %v69 = vand.u32 2147483647, %v62
    %v70 = vand.u32 %v69, 8388607
    %v71 = vor.u32 %v70, 8388608
    %v72 = vsub.s32 0, %v71
    %v73 = vadd.s32 %v68, 1
    %vm74 = vcmp.gt.s32.totalorder %v73, 0
    %v75 = vsel %vm74, %v73, 0
    %v76 = vshrl.u32 %v75, 5
    %v77 = vand.u32 %v75, 31
    %v78 = vsub.s32 32, %v77
    %v79 = vshrl.u32 683565275, %v78
    %v80 = vshll.u32 683565275, %v77
    %v81 = vshrl.u32 2475754826, %v78
    %v82 = vor.u32 %v80, %v81
    %v83 = vshll.u32 2475754826, %v77
    %v84 = vshrl.u32 2131351028, %v78
    %v85 = vor.u32 %v83, %v84
    %v86 = vshll.u32 2131351028, %v77
    %v87 = vshrl.u32 2102212464, %v78
    %v88 = vor.u32 %v86, %v87
    %v89 = vshll.u32 2102212464, %v77
    %v90 = vshrl.u32 920167782, %v78
    %v91 = vor.u32 %v89, %v90
    %v92 = vshll.u32 920167782, %v77
    %v93 = vshrl.u32 1326507024, %v78
    %v94 = vor.u32 %v92, %v93
    %vm95 = vcmp.lt.s32.totalorder %v76, 1
    %vm96 = vcmp.lt.s32.totalorder %v76, 2
    %vm97 = vcmp.lt.s32.totalorder %v76, 3
    %vm98 = vcmp.lt.s32.totalorder %v76, 4
    %v99 = vsel %vm95, %v79, %v82
    %v100 = vsel %vm98, %v88, 2102212464
    %v101 = vsel %vm97, %v85, %v100
    %v102 = vsel %vm96, %v99, %v101
    %v103 = vsel %vm95, %v82, %v85
    %v104 = vsel %vm98, %v91, 920167782
    %v105 = vsel %vm97, %v88, %v104
    %v106 = vsel %vm96, %v103, %v105
    %v107 = vsel %vm95, %v85, %v88
    %v108 = vsel %vm98, %v94, 1326507024
    %v109 = vsel %vm97, %v91, %v108
    %v110 = vsel %vm96, %v107, %v109
    %v111 = vshll.u32 %v71, 8
    %v112 = vmul.u32.u64.compose %v111, %v110
    %v113 = vextract.low.u32 %v112
    %v114 = vextract.high.u32 %v112
    %v115 = vmul.u32.u64.compose %v111, %v106
    %v116 = vextract.low.u32 %v115
    %v117 = vextract.high.u32 %v115
    %v118 = vmul.u32 %v111, %v102
    %v119 = vadd.s32 %v114, %v116
    %vm120 = vc.u32 %v114, %v116
    %v121 = vadd.s32 %v117, 1
    %v122 = vsel %vm120, %v121, %v117
    %v123 = vadd.s32 %v118, %v122
    %v124 = vadd.s32 %v123, 536870912
    %v125 = vshrl.u32 %v124, 30
    %v126 = vshll.u32 %v125, 30
    %v127 = vsub.s32 %v123, %v126
    %vm128 = vcmp.lt.s32.totalorder %v127, 0
    %v129 = vsub.s32 0, %v127
    %v130 = vsel %vm128, %v129, %v127
    %v131 = vclz %v130
    %v132 = vsub.s32 %v131, 2
    %vm133 = vcmp.gt.s32.totalorder 0, %v132
    %v134 = vsel %vm133, 0, %v132
    %v135 = vsub.s32 32, %v134
    %v136 = vshll.u32 %v127, %v134
    %v137 = vshrl.u32 %v119, %v135
    %v138 = vor.u32 %v136, %v137
    %v139 = vsub.s32 4294967266, %v134
    %v140 = vadd.s32 %v139, 127
    %v141 = vshll.u32 %v140, 23
    %v142 = vor.u32 4788187, %v141
    %v143 = vand.u32 2147483647, %v142
    %v145 = vcvt.s32.f32 %v138
    %v146 = vmul.f32 %v145, %v143
    %v147 = vxor.u32 %v146, 2147483648
    %v148 = vsel %vm65, %v147, %v146
    %v149 = vsub.s32 4, %v125
    %v150 = vsel %vm65, %v149, %v125
    %v151 = vsel %vm64, %v62, %v148
    %v152 = vsel %vm64, 0, %v150
    %v153 = vcosq.f32.pop %v151
    %v154 = vsinq.f32.pop %v151
    %vm155 = vweird.f32 %v62
    %v156 = vadd.s32 %v152, 3
    %v157 = vand.u32 %v156, 3
    %vm158 = vcmp.lt.s32.totalorder %v157, 2
    %vm159 = vcmp.eq.s32.totalorder %v157, 0
    %v160 = vxor.u32 %v154, 2147483648
    %v161 = vsel %vm159, %v153, %v160
    %vm162 = vcmp.eq.s32.totalorder %v157, 2
    %v163 = vxor.u32 %v153, 2147483648
    %v164 = vsel %vm162, %v163, %v154
    %v165 = vsel %vm158, %v161, %v164
    %v166 = vsel %vm155, nan, %v165
    %v167 = vadd.f32 %v21, %v166
    %vm168 = vcmask 523264
    %169 = vst.msk [vmem:[#allocation5] sm:$0xff] %vm168, %v167
    // Predicated region
    $region10: #{tpu_custom_call.1} parent=1 // pred_check
      _
    $region11: #{tpu_custom_call.1} parent=1 // pred_check_branch
      %171 = sbr.rel (0) target = $region13
    $region12: #{tpu_custom_call.1} parent=1 // pred_region
      %s173 = ssub.s32 128, 128
      %174 = vsyncadd [#allocation4], %s173
      %s176 = sshll.u32 [#allocation5], 4
      %s177 = int_to_ptr.vmem [resolvable:$true] %s176
      %179 = dma.vmem_to_hbm [thread:$0]  %s177, 128, %s1, [#allocation4]
    $region13: #{tpu_custom_call.1} parent=1 // pred_fallthru
      _
    // Predicated region
    $region14: #{tpu_custom_call.1} parent=1 // pred_check
      _
    $region15: #{tpu_custom_call.1} parent=1 // pred_check_branch
      %181 = sbr.rel (0) target = $region17
    $region16: #{tpu_custom_call.1} parent=1 // pred_region
      %182 = dma.done [#allocation4], 128
    $region17: #{tpu_custom_call.1} parent=1 // pred_fallthru
      _
    %183 = vsyncpa [#allocation3], 1
    %184 = vsyncpa [#allocation4], 1

</llo_original>
